<compile_context>
chip_gen: v7x
topology: tpu7x:2x2x1
jax: 0.10.0
libtpu: 0.0.40
codegen_flags: <defaults>
</compile_context>

<pallas_src>
import jax
import jax.numpy as jnp
from jax.experimental import pallas as pl
from jax.experimental.pallas import tpu as pltpu


def _round_up(x, m):
    return ((x + m - 1) // m) * m


def _layernorm(x, eps=1e-5):
    # LayerNorm over last dim, gamma=1, beta=0 (PyTorch default init; the
    # xavier re-init in _reset_parameters only touches params with dim > 1).
    # Independent sum(x) / sum(x*x) reductions -> both XLU reductions can
    # interleave instead of serializing behind a VPU subtract.
    inv_d = 1.0 / x.shape[-1]
    s1 = jnp.sum(x, axis=-1, keepdims=True)
    s2 = jnp.sum(x * x, axis=-1, keepdims=True)
    mu = s1 * inv_d
    var = jnp.maximum(s2 * inv_d - mu * mu, 0.0)  # guard tiny negative (cancellation)
    return (x - mu) * jax.lax.rsqrt(var + eps)


def ffn_kernel(x_ref, wt_ref, bt_ref, w1_ref, b1_ref, w2_ref, b2_ref, o_ref):
    # In-kernel f32 -> bf16 cast of the row tile (VPU cast, hidden under MXU).
    x = x_ref[...].astype(jnp.bfloat16)                       # (TM, Din_pad)

    # ---- transit branch: ReLU(Linear) + LayerNorm (f32 accumulate) ----
    t = jnp.dot(x, wt_ref[...], preferred_element_type=jnp.float32) + bt_ref[...]
    t = jnp.maximum(t, 0.0)                                    # ReLU
    t = _layernorm(t)                                          # transit_norm (f32)

    # ---- FFN: linear1 -> LeakyReLU(0.2) -> linear2 (bf16 MXU, f32 acc) ----
    h = jnp.dot(t.astype(jnp.bfloat16), w1_ref[...],
                preferred_element_type=jnp.float32) + b1_ref[...]
    h = jnp.maximum(h, 0.2 * h)                                # LeakyReLU(0.2)
    f = jnp.dot(h.astype(jnp.bfloat16), w2_ref[...],
                preferred_element_type=jnp.float32) + b2_ref[...]

    # residual + final LayerNorm (dropout = identity in eval mode)
    o_ref[...] = _layernorm(t + f).astype(o_ref.dtype)


def _prefer_tm():
    """Pick a preferred row-tile size from hardware VMEM capacity."""
    try:
        vmem = pltpu.get_tpu_info().vmem_capacity_bytes
    except Exception:
        return 256
    # v5e / v6e: 128 MiB VMEM -> bigger tiles amortize per-step overhead.
    # v7x: 64 MiB VMEM, 2 TCs -> smaller tiles, rely on even-grid split below.
    return 512 if vmem >= (100 << 20) else 256


def _choose_tm(M, prefer):
    """Largest tile with <= ~12.5% zero-row padding; then force an even grid
    of >= 2 so both v7x TensorCores get balanced work (no extra padding cost)."""
    cands = [c for c in (1024, 512, 256, 128, 64, 32, 16, 8) if c <= prefer]
    tm = 8
    for c in cands:
        if _round_up(M, c) - M <= 0.125 * M:
            tm = c
            break
    while tm > 8:
        grid = _round_up(M, tm) // tm
        if grid >= 2 and grid % 2 == 0:
            break
        tm //= 2
    return tm


def _vmem_budget_bytes(tm, din, dout, dh):
    w = 2 * (din * dout + dout * dh + dh * dout)   # bf16 weights, single-buffered
    b = 4 * (dout + dh + dout)                      # f32 biases
    x_tiles = 2 * tm * din * 4                      # f32 x tiles, double-buffered
    o_tiles = 2 * tm * dout * 4                     # f32 out tiles, double-buffered
    interm = tm * (4 * dout + dh) * 4               # t, f, t+f, h live f32 values
    return w + b + x_tiles + o_tiles + interm + (4 << 20)


def ffn_forward(x, params, *, tm=None):
    """x: (batch, seq, input_dim) float32 -> (batch, seq, output_dim) float32."""
    wt, bt, w1, b1, w2, b2 = params
    B, S, Din = x.shape
    Dout = wt.shape[1]
    Dh = w1.shape[1]  # == 2 * Dout
    M = B * S

    if tm is None:
        tm = _choose_tm(M, _prefer_tm())
    M_pad = _round_up(M, tm)

    # Pad Din to a lane-dense multiple of 128 (zeros -> no effect on the dot);
    # fold the row pad + column pad of x into one op, keep x in f32 (cast in kernel).
    Din_pad = _round_up(Din, 128)
    x2d = x.reshape(M, Din)
    if M_pad != M or Din_pad != Din:
        x2d = jnp.pad(x2d, ((0, M_pad - M), (0, Din_pad - Din)))

    # bf16 weights (halves resident VMEM, native MXU path); biases stay f32.
    wt_b = jnp.pad(wt, ((0, Din_pad - Din), (0, 0))).astype(jnp.bfloat16)
    w1_b = w1.astype(jnp.bfloat16)
    w2_b = w2.astype(jnp.bfloat16)

    grid = (M_pad // tm,)

    # Resident (never re-fetched) specs: constant index_map + single buffer.
    def resident(shape):
        return pl.BlockSpec(shape, lambda i: (0, 0), pipeline_mode=pl.Buffered(1))

    vmem_limit = int(min(max(_vmem_budget_bytes(tm, Din_pad, Dout, Dh), 32 << 20),
                         64 << 20))

    out = pl.pallas_call(
        ffn_kernel,
        out_shape=jax.ShapeDtypeStruct((M_pad, Dout), jnp.float32),
        grid_spec=pltpu.PrefetchScalarGridSpec(
            num_scalar_prefetch=0,
            grid=grid,
            in_specs=[
                # x: tiled over rows (double-buffered by the pipeline), f32
                pl.BlockSpec((tm, Din_pad), lambda i: (i, 0)),
                # weights / biases: VMEM-resident, single-buffered
                resident((Din_pad, Dout)),   # wt
                resident((1, Dout)),         # bt
                resident((Dout, Dh)),        # w1
                resident((1, Dh)),           # b1
                resident((Dh, Dout)),        # w2
                resident((1, Dout)),         # b2
            ],
            out_specs=pl.BlockSpec((tm, Dout), lambda i: (i, 0)),
        ),
        compiler_params=pltpu.CompilerParams(
            # Row tiles are independent -> shard across v7x's 2 TensorCores.
            dimension_semantics=("parallel",),
            vmem_limit_bytes=vmem_limit,
        ),
    )(x2d, wt_b, bt, w1_b, b1, w2_b, b2)

    return out[:M].reshape(B, S, Dout)


def init_params(key, input_dim, output_dim):
    """Deterministic init mirroring the module's shapes.
    Weights ~ xavier_uniform, biases ~ small uniform (like nn.Linear default).
    Weights are stored pre-transposed as (in_feat, out_feat)."""
    def xavier(k, fan_in, fan_out):
        bound = (6.0 / (fan_in + fan_out)) ** 0.5
        return jax.random.uniform(k, (fan_in, fan_out), jnp.float32, -bound, bound)

    ks = jax.random.split(key, 6)
    hid = output_dim * 2
    wt = xavier(ks[0], input_dim, output_dim)        # transit_linear.weight^T
    bt = jax.random.uniform(ks[1], (1, output_dim), jnp.float32, -0.1, 0.1)
    w1 = xavier(ks[2], output_dim, hid)              # linear1.weight^T
    b1 = jax.random.uniform(ks[3], (1, hid), jnp.float32, -0.1, 0.1)
    w2 = xavier(ks[4], hid, output_dim)              # linear2.weight^T
    b2 = jax.random.uniform(ks[5], (1, output_dim), jnp.float32, -0.1, 0.1)
    return (wt, bt, w1, b1, w2, b2)


def ffn_reference_mixed(x, params):
    """Pure-JAX reference of the same forward with the same mixed precision
    (bf16 matmul operands, f32 accumulation / elementwise), eval-mode dropout."""
    wt, bt, w1, b1, w2, b2 = params
    wt_b, w1_b, w2_b = (w.astype(jnp.bfloat16) for w in (wt, w1, w2))
    xb = x.astype(jnp.bfloat16)
    t = jnp.dot(xb, wt_b, preferred_element_type=jnp.float32) + bt
    t = jnp.maximum(t, 0.0)
    t = _layernorm(t)
    h = jnp.dot(t.astype(jnp.bfloat16), w1_b, preferred_element_type=jnp.float32) + b1
    h = jnp.maximum(h, 0.2 * h)
    f = jnp.dot(h.astype(jnp.bfloat16), w2_b, preferred_element_type=jnp.float32) + b2
    return _layernorm(t + f)


def ffn_reference_f32(x, params):
    """All-f32 reference (matches the PyTorch module math exactly, centered LN)."""
    wt, bt, w1, b1, w2, b2 = params

    def ln(v, eps=1e-5):
        mu = jnp.mean(v, axis=-1, keepdims=True)
        var = jnp.mean((v - mu) ** 2, axis=-1, keepdims=True)
        return (v - mu) * jax.lax.rsqrt(var + eps)

    t = jnp.maximum(x @ wt + bt, 0.0)
    t = ln(t)
    h = t @ w1 + b1
    h = jnp.where(h > 0, h, 0.2 * h)
    f = h @ w2 + b2
    return ln(t + f)


if __name__ == "__main__":
    key = jax.random.PRNGKey(0)
    kx, kp = jax.random.split(key)

    # Small demo shapes. output_dim=128 keeps the output last dim lane-dense;
    # input_dim != output_dim activates the transit branch, matching
    # FFN(input_dim, output_dim) defaults (norm_flag=True, activation='lrelu').
    batch, seq, input_dim, output_dim = 2, 8, 64, 128
    x = jax.random.normal(kx, (batch, seq, input_dim), jnp.float32)
    params = init_params(kp, input_dim, output_dim)

    out = ffn_forward(x, params)
    out = jax.block_until_ready(out)

    assert out.shape == (batch, seq, output_dim)

    ref_mixed = ffn_reference_mixed(x, params)
    assert jnp.allclose(out, ref_mixed, atol=1e-2, rtol=1e-2), \
        "mismatch vs mixed-precision reference"

    # Looser sanity check against the exact f32 math of the PyTorch module.
    ref_f32 = ffn_reference_f32(x, params)
    assert jnp.allclose(out, ref_f32, atol=1e-1, rtol=1e-1), \
        "mismatch vs f32 reference"

    print("KERNEL_OK")
</pallas_src>

<mosaic_0001>
module attributes {stable_mosaic.version = 11 : i64} {
  func.func @ffn_kernel(%arg0: i32, %arg1: memref<8x128xf32, #tpu.memory_space<vmem>>, %arg2: memref<128x128xbf16, #tpu.memory_space<vmem>>, %arg3: memref<1x128xf32, #tpu.memory_space<vmem>>, %arg4: memref<128x256xbf16, #tpu.memory_space<vmem>>, %arg5: memref<1x256xf32, #tpu.memory_space<vmem>>, %arg6: memref<256x128xbf16, #tpu.memory_space<vmem>>, %arg7: memref<1x128xf32, #tpu.memory_space<vmem>>, %arg8: memref<8x128xf32, #tpu.memory_space<vmem>>) attributes {dimension_semantics = [#tpu.dimension_semantics<parallel>], iteration_bounds = array<i64: 2>, scalar_prefetch = 0 : i64, scratch_operands = 0 : i64, tpu.core_type = #tpu.core_type<tc>, window_params = [{transform_indices = @transform_0, window_bounds = array<i64: 8, 128>}, {pipeline_mode = #tpu.pipeline_mode<synchronous>, transform_indices = @transform_1, window_bounds = array<i64: 128, 128>}, {pipeline_mode = #tpu.pipeline_mode<synchronous>, transform_indices = @transform_2, window_bounds = array<i64: 1, 128>}, {pipeline_mode = #tpu.pipeline_mode<synchronous>, transform_indices = @transform_3, window_bounds = array<i64: 128, 256>}, {pipeline_mode = #tpu.pipeline_mode<synchronous>, transform_indices = @transform_4, window_bounds = array<i64: 1, 256>}, {pipeline_mode = #tpu.pipeline_mode<synchronous>, transform_indices = @transform_5, window_bounds = array<i64: 256, 128>}, {pipeline_mode = #tpu.pipeline_mode<synchronous>, transform_indices = @transform_6, window_bounds = array<i64: 1, 128>}, {transform_indices = @transform_7, window_bounds = array<i64: 8, 128>}]} {
    %c0 = arith.constant 0 : index
    %c0_0 = arith.constant 0 : index
    %0 = vector.load %arg1[%c0, %c0_0] : memref<8x128xf32, #tpu.memory_space<vmem>>, vector<8x128xf32>
    %1 = arith.truncf %0 : vector<8x128xf32> to vector<8x128xbf16>
    %c0_1 = arith.constant 0 : index
    %c0_2 = arith.constant 0 : index
    %2 = vector.load %arg2[%c0_1, %c0_2] : memref<128x128xbf16, #tpu.memory_space<vmem>>, vector<128x128xbf16>
    %cst = arith.constant dense<0.000000e+00> : vector<8x128xf32>
    %3 = tpu.matmul %1, %2, %cst {dimension_numbers = #tpu.dot_dimension_numbers<[1], [0], [0], [1], [0, 0, 1, 1], [], []>} : vector<8x128xbf16>, vector<128x128xbf16>, vector<8x128xf32> -> vector<8x128xf32>
    %c0_3 = arith.constant 0 : index
    %c0_4 = arith.constant 0 : index
    %4 = vector.load %arg3[%c0_3, %c0_4] : memref<1x128xf32, #tpu.memory_space<vmem>>, vector<1x128xf32>
    %5 = vector.broadcast %4 : vector<1x128xf32> to vector<8x128xf32>
    %6 = arith.addf %3, %5 : vector<8x128xf32>
    %cst_5 = arith.constant 0.000000e+00 : f32
    %7 = vector.broadcast %cst_5 : f32 to vector<8x128xf32>
    %8 = arith.maximumf %6, %7 : vector<8x128xf32>
    %cst_6 = arith.constant dense<0.000000e+00> : vector<8xf32>
    %9 = vector.multi_reduction <add>, %8, %cst_6 [1] : vector<8x128xf32> to vector<8xf32>
    %10 = vector.shape_cast %9 : vector<8xf32> to vector<8x1xf32>
    %11 = arith.mulf %8, %8 : vector<8x128xf32>
    %cst_7 = arith.constant dense<0.000000e+00> : vector<8xf32>
    %12 = vector.multi_reduction <add>, %11, %cst_7 [1] : vector<8x128xf32> to vector<8xf32>
    %13 = vector.shape_cast %12 : vector<8xf32> to vector<8x1xf32>
    %cst_8 = arith.constant 7.812500e-03 : f32
    %14 = vector.broadcast %cst_8 : f32 to vector<8x1xf32>
    %15 = arith.mulf %10, %14 : vector<8x1xf32>
    %cst_9 = arith.constant 7.812500e-03 : f32
    %16 = vector.broadcast %cst_9 : f32 to vector<8x1xf32>
    %17 = arith.mulf %13, %16 : vector<8x1xf32>
    %18 = arith.mulf %15, %15 : vector<8x1xf32>
    %19 = arith.subf %17, %18 : vector<8x1xf32>
    %cst_10 = arith.constant 0.000000e+00 : f32
    %20 = vector.broadcast %cst_10 : f32 to vector<8x1xf32>
    %21 = arith.maximumf %19, %20 : vector<8x1xf32>
    %22 = vector.broadcast %15 : vector<8x1xf32> to vector<8x128xf32>
    %23 = arith.subf %8, %22 : vector<8x128xf32>
    %cst_11 = arith.constant 9.99999974E-6 : f32
    %24 = vector.broadcast %cst_11 : f32 to vector<8x1xf32>
    %25 = arith.addf %21, %24 : vector<8x1xf32>
    %26 = math.rsqrt %25 : vector<8x1xf32>
    %27 = vector.broadcast %26 : vector<8x1xf32> to vector<8x128xf32>
    %28 = arith.mulf %23, %27 : vector<8x128xf32>
    %29 = arith.truncf %28 : vector<8x128xf32> to vector<8x128xbf16>
    %c0_12 = arith.constant 0 : index
    %c0_13 = arith.constant 0 : index
    %30 = vector.load %arg4[%c0_12, %c0_13] : memref<128x256xbf16, #tpu.memory_space<vmem>>, vector<128x256xbf16>
    %cst_14 = arith.constant dense<0.000000e+00> : vector<8x256xf32>
    %31 = tpu.matmul %29, %30, %cst_14 {dimension_numbers = #tpu.dot_dimension_numbers<[1], [0], [0], [1], [0, 0, 1, 1], [], []>} : vector<8x128xbf16>, vector<128x256xbf16>, vector<8x256xf32> -> vector<8x256xf32>
    %c0_15 = arith.constant 0 : index
    %c0_16 = arith.constant 0 : index
    %32 = vector.load %arg5[%c0_15, %c0_16] : memref<1x256xf32, #tpu.memory_space<vmem>>, vector<1x256xf32>
    %33 = vector.broadcast %32 : vector<1x256xf32> to vector<8x256xf32>
    %34 = arith.addf %31, %33 : vector<8x256xf32>
    %cst_17 = arith.constant 2.000000e-01 : f32
    %35 = vector.broadcast %cst_17 : f32 to vector<8x256xf32>
    %36 = arith.mulf %35, %34 : vector<8x256xf32>
    %37 = arith.maximumf %34, %36 : vector<8x256xf32>
    %38 = arith.truncf %37 : vector<8x256xf32> to vector<8x256xbf16>
    %c0_18 = arith.constant 0 : index
    %c0_19 = arith.constant 0 : index
    %39 = vector.load %arg6[%c0_18, %c0_19] : memref<256x128xbf16, #tpu.memory_space<vmem>>, vector<256x128xbf16>
    %cst_20 = arith.constant dense<0.000000e+00> : vector<8x128xf32>
    %40 = tpu.matmul %38, %39, %cst_20 {dimension_numbers = #tpu.dot_dimension_numbers<[1], [0], [0], [1], [0, 0, 1, 1], [], []>} : vector<8x256xbf16>, vector<256x128xbf16>, vector<8x128xf32> -> vector<8x128xf32>
    %c0_21 = arith.constant 0 : index
    %c0_22 = arith.constant 0 : index
    %41 = vector.load %arg7[%c0_21, %c0_22] : memref<1x128xf32, #tpu.memory_space<vmem>>, vector<1x128xf32>
    %42 = vector.broadcast %41 : vector<1x128xf32> to vector<8x128xf32>
    %43 = arith.addf %40, %42 : vector<8x128xf32>
    %44 = arith.addf %28, %43 : vector<8x128xf32>
    %cst_23 = arith.constant dense<0.000000e+00> : vector<8xf32>
    %45 = vector.multi_reduction <add>, %44, %cst_23 [1] : vector<8x128xf32> to vector<8xf32>
    %46 = vector.shape_cast %45 : vector<8xf32> to vector<8x1xf32>
    %47 = arith.mulf %44, %44 : vector<8x128xf32>
    %cst_24 = arith.constant dense<0.000000e+00> : vector<8xf32>
    %48 = vector.multi_reduction <add>, %47, %cst_24 [1] : vector<8x128xf32> to vector<8xf32>
    %49 = vector.shape_cast %48 : vector<8xf32> to vector<8x1xf32>
    %cst_25 = arith.constant 7.812500e-03 : f32
    %50 = vector.broadcast %cst_25 : f32 to vector<8x1xf32>
    %51 = arith.mulf %46, %50 : vector<8x1xf32>
    %cst_26 = arith.constant 7.812500e-03 : f32
    %52 = vector.broadcast %cst_26 : f32 to vector<8x1xf32>
    %53 = arith.mulf %49, %52 : vector<8x1xf32>
    %54 = arith.mulf %51, %51 : vector<8x1xf32>
    %55 = arith.subf %53, %54 : vector<8x1xf32>
    %cst_27 = arith.constant 0.000000e+00 : f32
    %56 = vector.broadcast %cst_27 : f32 to vector<8x1xf32>
    %57 = arith.maximumf %55, %56 : vector<8x1xf32>
    %58 = vector.broadcast %51 : vector<8x1xf32> to vector<8x128xf32>
    %59 = arith.subf %44, %58 : vector<8x128xf32>
    %cst_28 = arith.constant 9.99999974E-6 : f32
    %60 = vector.broadcast %cst_28 : f32 to vector<8x1xf32>
    %61 = arith.addf %57, %60 : vector<8x1xf32>
    %62 = math.rsqrt %61 : vector<8x1xf32>
    %63 = vector.broadcast %62 : vector<8x1xf32> to vector<8x128xf32>
    %64 = arith.mulf %59, %63 : vector<8x128xf32>
    %c0_29 = arith.constant 0 : index
    %c0_30 = arith.constant 0 : index
    %65 = vector.load %arg8[%c0_29, %c0_30] : memref<8x128xf32, #tpu.memory_space<vmem>>, vector<8x128xf32>
    tpu.vector_store %arg8[%c0_29, %c0_30], %64 {strides = array<i32>} : memref<8x128xf32, #tpu.memory_space<vmem>>, vector<8x128xf32>,
    return
  }
  func.func @transform_0(%arg0: i32) -> (i32, i32) {
    %c0_i32 = arith.constant 0 : i32
    %c0_i32_0 = arith.constant 0 : i32
    return %arg0, %c0_i32 : i32, i32
  }
  func.func @transform_1(%arg0: i32) -> (i32, i32) {
    %c0_i32 = arith.constant 0 : i32
    %c0_i32_0 = arith.constant 0 : i32
    %c0_i32_1 = arith.constant 0 : i32
    return %c0_i32, %c0_i32_0 : i32, i32
  }
  func.func @transform_2(%arg0: i32) -> (i32, i32) {
    %c0_i32 = arith.constant 0 : i32
    %c0_i32_0 = arith.constant 0 : i32
    %c0_i32_1 = arith.constant 0 : i32
    return %c0_i32, %c0_i32_0 : i32, i32
  }
  func.func @transform_3(%arg0: i32) -> (i32, i32) {
    %c0_i32 = arith.constant 0 : i32
    %c0_i32_0 = arith.constant 0 : i32
    %c0_i32_1 = arith.constant 0 : i32
    return %c0_i32, %c0_i32_0 : i32, i32
  }
  func.func @transform_4(%arg0: i32) -> (i32, i32) {
    %c0_i32 = arith.constant 0 : i32
    %c0_i32_0 = arith.constant 0 : i32
    %c0_i32_1 = arith.constant 0 : i32
    return %c0_i32, %c0_i32_0 : i32, i32
  }
  func.func @transform_5(%arg0: i32) -> (i32, i32) {
    %c0_i32 = arith.constant 0 : i32
    %c0_i32_0 = arith.constant 0 : i32
    %c0_i32_1 = arith.constant 0 : i32
    return %c0_i32, %c0_i32_0 : i32, i32
  }
  func.func @transform_6(%arg0: i32) -> (i32, i32) {
    %c0_i32 = arith.constant 0 : i32
    %c0_i32_0 = arith.constant 0 : i32
    %c0_i32_1 = arith.constant 0 : i32
    return %c0_i32, %c0_i32_0 : i32, i32
  }
  func.func @transform_7(%arg0: i32) -> (i32, i32) {
    %c0_i32 = arith.constant 0 : i32
    %c0_i32_0 = arith.constant 0 : i32
    return %arg0, %c0_i32 : i32, i32
  }
}

</mosaic_0001>

<llo_original>
// kernel: tpu_custom_call.1
$region0: #{tpu_custom_call.1}
  #allocation0 [shape = 'u32[]', space=smem, size = 0x4, offset = 0x4, fixed_abs, tag = 'smem constant byte address 0x4 - core index']
  #allocation1 [shape = 'u32[144,128]{1,0:T(1,128)}', space=vmem, size = 0x12000, scoped, tag = 'internal scratch']
  %s0 = inlined_call_operand.hbm [shape: f32[16,128], index: 0, kind: input, shape index: {}]
  %s1 = inlined_call_operand.hbm [shape: bf16[128,128], index: 1, kind: input, shape index: {}]
  %s2 = inlined_call_operand.vmem [shape: f32[1,128], index: 2, kind: input, shape index: {}]
  %s3 = inlined_call_operand.hbm [shape: bf16[128,256], index: 3, kind: input, shape index: {}]
  %s4 = inlined_call_operand.vmem [shape: f32[1,256], index: 4, kind: input, shape index: {}]
  %s5 = inlined_call_operand.hbm [shape: bf16[256,128], index: 5, kind: input, shape index: {}]
  %s6 = inlined_call_operand.vmem [shape: f32[1,128], index: 6, kind: input, shape index: {}]
  %s7 = inlined_call_operand.hbm [shape: f32[16,128], index: 7, kind: output, shape index: {}]
  %s8 = sld [smem:[#allocation0]]
  $region77: #{tpu_custom_call.1} parent=0
    _
  %s10 = ssub.s32 1, %s8
  %s11 = scalar_select 0, %s10, %s8
  $region1: #{tpu_custom_call.1} parent=0
    #allocation2 [shape = 'u8[8192]{0}', space=vmem, size = 0x2000, scoped, tag = 'input window, operand 0']
    #allocation3 [shape = 's32[2]{0}', space=sflag, size = 0x8, scoped, tag = 'scoped memory for tpu_custom_call.1']
    #allocation4 [shape = 's32[2]{0}', space=sflag, size = 0x8, scoped, tag = 'scoped memory for tpu_custom_call.1']
    #allocation5 [shape = 'u8[32768]{0}', space=vmem, size = 0x8000, scoped, tag = 'input window, operand 1, single buffered']
    #allocation6 [shape = 's32[1]{0}', space=sflag, size = 0x4, scoped, tag = 'scoped memory for tpu_custom_call.1']
    #allocation7 [shape = 'u8[65536]{0}', space=vmem, size = 0x10000, scoped, tag = 'input window, operand 3, single buffered']
    #allocation8 [shape = 'u8[65536]{0}', space=vmem, size = 0x10000, scoped, tag = 'input window, operand 5, single buffered']
    #allocation9 [shape = 's32[1]{0}', space=sflag, size = 0x4, scoped, tag = 'scoped memory for tpu_custom_call.1']
    #allocation10 [shape = 'u8[8192]{0}', space=vmem, size = 0x2000, scoped, tag = 'output window, operand 0']
    %12 = vsyncpa [#allocation3], 0
    %s13 = scalar_lea.sflag [#allocation3], 1
    %14 = vsyncpa %s13, 0
    %15 = vsyncpa [#allocation6], 0
    %16 = vsyncpa [#allocation9], 0
    %17 = vsyncpa [#allocation4], 0
    %s18 = scalar_lea.sflag [#allocation4], 1
    %19 = vsyncpa %s18, 0
    loop: start=0, step=1, limit=4
    $region2: #{tpu_custom_call.1} parent=1 // loop_pre_header
      _
    $region3: #{tpu_custom_call.1} parent=1 // loop_header
      %s21 = sphi 0, %s25
      %p22 = scmp.ge.s32.totalorder %s21, 4
      %s31 = sphi 0, %s33
      %s34 = sphi 0, %s31
      %s35 = sphi 0, %s34
      %s51 = sphi 0, %s35
      %s55 = sphi 0, %s55
      %s57 = sphi 0, %s55
      %s58 = sphi 0, %s57
      %s72 = sphi 0, %s58
      %s76 = sphi 0, %s76
      %s78 = sphi 0, %s76
      %s79 = sphi 0, %s78
      %s93 = sphi 0, %s79
      %s97 = sphi 0, %s97
      %s99 = sphi 0, %s97
      %s100 = sphi 0, %s99
      %s114 = sphi 0, %s100
      %s118 = sphi 0, %s118
      %s120 = sphi 0, %s118
      %s121 = sphi 0, %s120
      %s135 = sphi 0, %s121
      %s139 = sphi 0, %s139
      %s141 = sphi 0, %s139
      %s142 = sphi 0, %s141
      %s156 = sphi 0, %s142
      %s160 = sphi 0, %s160
      %s162 = sphi 0, %s160
      %s163 = sphi 0, %s162
      %s177 = sphi 0, %s163
      %s183 = sphi 0, %s185
      %s186 = sphi 0, %s183
      %s187 = sphi 0, %s186
      %s203 = sphi 0, %s187
    $region4: #{tpu_custom_call.1} parent=1 // loop_header_branch
      %24 = sbr.rel (%p22) target = $region8
    $region5: #{tpu_custom_call.1} parent=1 // loop_body
      %s26 = ssub.s32 %s21, 1
      %s27 = ssub.s32 %s21, 2
      %s28 = sadd.s32 %s21, 1
      %s29 = ssub.s32 %s21, %s28
      %p30 = scmp.eq.s32.totalorder %s29, 0
      %s32 = sadd.s32 %s31, 1
      %s33 = scalar_select %p30, %s31, %s32
      %p36 = pneg %p30
      %p37 = scmp.eq.s32.totalorder %s21, 1
      %p38 = por %p36, %p37
      %p39 = scmp.ne.s32.totalorder %s31, %s34
      %p40 = scmp.eq.s32.totalorder %s21, 0
      %p41 = por %p39, %p40
      %p42 = scmp.ne.s32.totalorder %s31, %s34
      %p43 = scmp.eq.s32.totalorder %s26, 1
      %p44 = por %p42, %p43
      %p45 = scmp.ne.s32.totalorder %s34, %s35
      %p46 = scmp.eq.s32.totalorder %s26, 0
      %p47 = por %p45, %p46
      %p48 = scmp.ne.s32.totalorder %s34, %s35
      %p49 = scmp.eq.s32.totalorder %s27, 1
      %p50 = por %p48, %p49
      %p52 = scmp.ne.s32.totalorder %s35, %s51
      %p53 = scmp.eq.s32.totalorder %s27, 0
      %p54 = por %p52, %p53
      %s56 = sadd.s32 %s55, 1
      %p59 = scmp.eq.s32.totalorder %s21, 1
      %p60 = scmp.ne.s32.totalorder %s55, %s57
      %p61 = scmp.eq.s32.totalorder %s21, 0
      %p62 = por %p60, %p61
      %p63 = scmp.ne.s32.totalorder %s55, %s57
      %p64 = scmp.eq.s32.totalorder %s26, 1
      %p65 = por %p63, %p64
      %p66 = scmp.ne.s32.totalorder %s57, %s58
      %p67 = scmp.eq.s32.totalorder %s26, 0
      %p68 = por %p66, %p67
      %p69 = scmp.ne.s32.totalorder %s57, %s58
      %p70 = scmp.eq.s32.totalorder %s27, 1
      %p71 = por %p69, %p70
      %p73 = scmp.ne.s32.totalorder %s58, %s72
      %p74 = scmp.eq.s32.totalorder %s27, 0
      %p75 = por %p73, %p74
      %s77 = sadd.s32 %s76, 1
      %p80 = scmp.eq.s32.totalorder %s21, 1
      %p81 = scmp.ne.s32.totalorder %s76, %s78
      %p82 = scmp.eq.s32.totalorder %s21, 0
      %p83 = por %p81, %p82
      %p84 = scmp.ne.s32.totalorder %s76, %s78
      %p85 = scmp.eq.s32.totalorder %s26, 1
      %p86 = por %p84, %p85
      %p87 = scmp.ne.s32.totalorder %s78, %s79
      %p88 = scmp.eq.s32.totalorder %s26, 0
      %p89 = por %p87, %p88
      %p90 = scmp.ne.s32.totalorder %s78, %s79
      %p91 = scmp.eq.s32.totalorder %s27, 1
      %p92 = por %p90, %p91
      %p94 = scmp.ne.s32.totalorder %s79, %s93
      %p95 = scmp.eq.s32.totalorder %s27, 0
      %p96 = por %p94, %p95
      %s98 = sadd.s32 %s97, 1
      %p101 = scmp.eq.s32.totalorder %s21, 1
      %p102 = scmp.ne.s32.totalorder %s97, %s99
      %p103 = scmp.eq.s32.totalorder %s21, 0
      %p104 = por %p102, %p103
      %p105 = scmp.ne.s32.totalorder %s97, %s99
      %p106 = scmp.eq.s32.totalorder %s26, 1
      %p107 = por %p105, %p106
      %p108 = scmp.ne.s32.totalorder %s99, %s100
      %p109 = scmp.eq.s32.totalorder %s26, 0
      %p110 = por %p108, %p109
      %p111 = scmp.ne.s32.totalorder %s99, %s100
      %p112 = scmp.eq.s32.totalorder %s27, 1
      %p113 = por %p111, %p112
      %p115 = scmp.ne.s32.totalorder %s100, %s114
      %p116 = scmp.eq.s32.totalorder %s27, 0
      %p117 = por %p115, %p116
      %s119 = sadd.s32 %s118, 1
      %p122 = scmp.eq.s32.totalorder %s21, 1
      %p123 = scmp.ne.s32.totalorder %s118, %s120
      %p124 = scmp.eq.s32.totalorder %s21, 0
      %p125 = por %p123, %p124
      %p126 = scmp.ne.s32.totalorder %s118, %s120
      %p127 = scmp.eq.s32.totalorder %s26, 1
      %p128 = por %p126, %p127
      %p129 = scmp.ne.s32.totalorder %s120, %s121
      %p130 = scmp.eq.s32.totalorder %s26, 0
      %p131 = por %p129, %p130
      %p132 = scmp.ne.s32.totalorder %s120, %s121
      %p133 = scmp.eq.s32.totalorder %s27, 1
      %p134 = por %p132, %p133
      %p136 = scmp.ne.s32.totalorder %s121, %s135
      %p137 = scmp.eq.s32.totalorder %s27, 0
      %p138 = por %p136, %p137
      %s140 = sadd.s32 %s139, 1
      %p143 = scmp.eq.s32.totalorder %s21, 1
      %p144 = scmp.ne.s32.totalorder %s139, %s141
      %p145 = scmp.eq.s32.totalorder %s21, 0
      %p146 = por %p144, %p145
      %p147 = scmp.ne.s32.totalorder %s139, %s141
      %p148 = scmp.eq.s32.totalorder %s26, 1
      %p149 = por %p147, %p148
      %p150 = scmp.ne.s32.totalorder %s141, %s142
      %p151 = scmp.eq.s32.totalorder %s26, 0
      %p152 = por %p150, %p151
      %p153 = scmp.ne.s32.totalorder %s141, %s142
      %p154 = scmp.eq.s32.totalorder %s27, 1
      %p155 = por %p153, %p154
      %p157 = scmp.ne.s32.totalorder %s142, %s156
      %p158 = scmp.eq.s32.totalorder %s27, 0
      %p159 = por %p157, %p158
      %s161 = sadd.s32 %s160, 1
      %p164 = scmp.eq.s32.totalorder %s21, 1
      %p165 = scmp.ne.s32.totalorder %s160, %s162
      %p166 = scmp.eq.s32.totalorder %s21, 0
      %p167 = por %p165, %p166
      %p168 = scmp.ne.s32.totalorder %s160, %s162
      %p169 = scmp.eq.s32.totalorder %s26, 1
      %p170 = por %p168, %p169
      %p171 = scmp.ne.s32.totalorder %s162, %s163
      %p172 = scmp.eq.s32.totalorder %s26, 0
      %p173 = por %p171, %p172
      %p174 = scmp.ne.s32.totalorder %s162, %s163
      %p175 = scmp.eq.s32.totalorder %s27, 1
      %p176 = por %p174, %p175
      %p178 = scmp.ne.s32.totalorder %s163, %s177
      %p179 = scmp.eq.s32.totalorder %s27, 0
      %p180 = por %p178, %p179
      %s181 = ssub.s32 %s21, %s28
      %p182 = scmp.eq.s32.totalorder %s181, 0
      %s184 = sadd.s32 %s183, 1
      %s185 = scalar_select %p182, %s183, %s184
      %p188 = pneg %p182
      %p189 = scmp.eq.s32.totalorder %s21, 1
      %p190 = por %p188, %p189
      %p191 = scmp.ne.s32.totalorder %s183, %s186
      %p192 = scmp.eq.s32.totalorder %s21, 0
      %p193 = por %p191, %p192
      %p194 = scmp.ne.s32.totalorder %s183, %s186
      %p195 = scmp.eq.s32.totalorder %s26, 1
      %p196 = por %p194, %p195
      %p197 = scmp.ne.s32.totalorder %s186, %s187
      %p198 = scmp.eq.s32.totalorder %s26, 0
      %p199 = por %p197, %p198
      %p200 = scmp.ne.s32.totalorder %s186, %s187
      %p201 = scmp.eq.s32.totalorder %s27, 1
      %p202 = por %p200, %p201
      %p204 = scmp.ne.s32.totalorder %s187, %s203
      %p205 = scmp.eq.s32.totalorder %s27, 0
      %p206 = por %p204, %p205
      %p207 = scmp.le.s32.totalorder 1, %s21
      %p208 = scmp.lt.s32.totalorder %s21, 3
      %p209 = pnand %p207, %p208
      %p210 = pneg %p209
      // Predicated region
      $region9: #{tpu_custom_call.1} parent=5 // pred_check
        _
      $region10: #{tpu_custom_call.1} parent=5 // pred_check_branch
        %212 = sbr.rel (%p209) target = $region12
      $region11: #{tpu_custom_call.1} parent=5 // pred_region
        %s213 = ssub.s32 %s21, 1
        // Predicated region
        $region13: #{tpu_custom_call.1} parent=11 // pred_check
          %p214 = pneg %p68
        $region14: #{tpu_custom_call.1} parent=11 // pred_check_branch
          %216 = sbr.rel (%p214) target = $region16
        $region15: #{tpu_custom_call.1} parent=11 // pred_region
          %s218 = ssub.s32 1024, 1024
          %219 = vsyncadd [#allocation6], %s218
          %s220 = sshll.u32 [#allocation5], 4
          %s221 = int_to_ptr.vmem [resolvable:$true] %s220
          %226 = dma.hbm_to_vmem [thread:$0]  %s1, 1024, %s221, [#allocation6], 64, 64, 4
        $region16: #{tpu_custom_call.1} parent=11 // pred_fallthru
          _
        // Predicated region
        $region17: #{tpu_custom_call.1} parent=11 // pred_check
          %p227 = pneg %p89
        $region18: #{tpu_custom_call.1} parent=11 // pred_check_branch
          %229 = sbr.rel (%p227) target = $region20
        $region19: #{tpu_custom_call.1} parent=11 // pred_region
          _
        $region20: #{tpu_custom_call.1} parent=11 // pred_fallthru
          _
        // Predicated region
        $region21: #{tpu_custom_call.1} parent=11 // pred_check
          %p230 = pneg %p110
        $region22: #{tpu_custom_call.1} parent=11 // pred_check_branch
          %232 = sbr.rel (%p230) target = $region24
        $region23: #{tpu_custom_call.1} parent=11 // pred_region
          %s234 = ssub.s32 2048, 2048
          %235 = vsyncadd [#allocation6], %s234
          %s236 = sshll.u32 [#allocation7], 4
          %s237 = int_to_ptr.vmem [resolvable:$true] %s236
          %242 = dma.hbm_to_vmem [thread:$0]  %s3, 2048, %s237, [#allocation6], 128, 128, 8
        $region24: #{tpu_custom_call.1} parent=11 // pred_fallthru
          _
        // Predicated region
        $region25: #{tpu_custom_call.1} parent=11 // pred_check
          %p243 = pneg %p131
        $region26: #{tpu_custom_call.1} parent=11 // pred_check_branch
          %245 = sbr.rel (%p243) target = $region28
        $region27: #{tpu_custom_call.1} parent=11 // pred_region
          _
        $region28: #{tpu_custom_call.1} parent=11 // pred_fallthru
          _
        // Predicated region
        $region29: #{tpu_custom_call.1} parent=11 // pred_check
          %p246 = pneg %p152
        $region30: #{tpu_custom_call.1} parent=11 // pred_check_branch
          %248 = sbr.rel (%p246) target = $region32
        $region31: #{tpu_custom_call.1} parent=11 // pred_region
          %s250 = ssub.s32 2048, 2048
          %251 = vsyncadd [#allocation9], %s250
          %s252 = sshll.u32 [#allocation8], 4
          %s253 = int_to_ptr.vmem [resolvable:$true] %s252
          %258 = dma.hbm_to_vmem [thread:$0]  %s5, 2048, %s253, [#allocation9], 64, 64, 4
        $region32: #{tpu_custom_call.1} parent=11 // pred_fallthru
          _
        // Predicated region
        $region33: #{tpu_custom_call.1} parent=11 // pred_check
          %p259 = pneg %p173
        $region34: #{tpu_custom_call.1} parent=11 // pred_check_branch
          %261 = sbr.rel (%p259) target = $region36
        $region35: #{tpu_custom_call.1} parent=11 // pred_region
          _
        $region36: #{tpu_custom_call.1} parent=11 // pred_fallthru
          _
      $region12: #{tpu_custom_call.1} parent=5 // pred_fallthru
        _
      %p262 = scmp.lt.s32.totalorder %s21, 2
      // Predicated region
      $region37: #{tpu_custom_call.1} parent=5 // pred_check
        %p263 = pneg %p262
      $region38: #{tpu_custom_call.1} parent=5 // pred_check_branch
        %265 = sbr.rel (%p263) target = $region40
      $region39: #{tpu_custom_call.1} parent=5 // pred_region
        // Predicated region
        $region41: #{tpu_custom_call.1} parent=39 // pred_check
          %p266 = pneg %p41
        $region42: #{tpu_custom_call.1} parent=39 // pred_check_branch
          %268 = sbr.rel (%p266) target = $region44
        $region43: #{tpu_custom_call.1} parent=39 // pred_region
          %s269 = sand.u32 %s31, 1
          %s270 = scalar_lea.sflag [#allocation3], %s269
          %s271 = sand.u32 %s31, 1
          %s272 = smul.addr %s271, 8
          %s273 = scalar_lea.vmem [#allocation2], %s272
          %s275 = ssub.s32 128, 128
          %276 = vsyncadd %s270, %s275
          %s277 = smul.addr %s21, 128
          %s278 = scalar_lea.hbm %s0, %s277
          %s280 = sshll.u32 %s273, 4
          %s281 = int_to_ptr.vmem [resolvable:$true] %s280
          %283 = dma.hbm_to_vmem [thread:$0]  %s278, 128, %s281, %s270
        $region44: #{tpu_custom_call.1} parent=39 // pred_fallthru
          _
      $region40: #{tpu_custom_call.1} parent=5 // pred_fallthru
        _
      %p284 = scmp.le.s32.totalorder 1, %s21
      %p285 = scmp.lt.s32.totalorder %s21, 3
      %p286 = pnand %p284, %p285
      %p287 = pneg %p286
      // Predicated region
      $region45: #{tpu_custom_call.1} parent=5 // pred_check
        _
      $region46: #{tpu_custom_call.1} parent=5 // pred_check_branch
        %289 = sbr.rel (%p286) target = $region48
      $region47: #{tpu_custom_call.1} parent=5 // pred_region
        %s290 = ssub.s32 %s21, 1
        %s291 = sand.u32 %s34, 1
        %s292 = scalar_lea.sflag [#allocation3], %s291
        %s293 = sand.u32 %s34, 1
        %s294 = smul.addr %s293, 8
        %s295 = scalar_lea.vmem [#allocation2], %s294
        // Predicated region
        $region49: #{tpu_custom_call.1} parent=47 // pred_check
          %p296 = pneg %p47
        $region50: #{tpu_custom_call.1} parent=47 // pred_check_branch
          %298 = sbr.rel (%p296) target = $region52
        $region51: #{tpu_custom_call.1} parent=47 // pred_region
          %299 = dma.done %s292, 128
        $region52: #{tpu_custom_call.1} parent=47 // pred_fallthru
          _
        // Predicated region
        $region53: #{tpu_custom_call.1} parent=47 // pred_check
          %p300 = pneg %p68
        $region54: #{tpu_custom_call.1} parent=47 // pred_check_branch
          %302 = sbr.rel (%p300) target = $region56
        $region55: #{tpu_custom_call.1} parent=47 // pred_region
          %303 = dma.done [#allocation6], 1024
        $region56: #{tpu_custom_call.1} parent=47 // pred_fallthru
          _
        // Predicated region
        $region57: #{tpu_custom_call.1} parent=47 // pred_check
          %p304 = pneg %p110
        $region58: #{tpu_custom_call.1} parent=47 // pred_check_branch
          %306 = sbr.rel (%p304) target = $region60
        $region59: #{tpu_custom_call.1} parent=47 // pred_region
          %307 = dma.done [#allocation6], 2048
        $region60: #{tpu_custom_call.1} parent=47 // pred_fallthru
          _
        // Predicated region
        $region61: #{tpu_custom_call.1} parent=47 // pred_check
          %p308 = pneg %p152
        $region62: #{tpu_custom_call.1} parent=47 // pred_check_branch
          %310 = sbr.rel (%p308) target = $region64
        $region63: #{tpu_custom_call.1} parent=47 // pred_region
          %311 = dma.done [#allocation9], 2048
        $region64: #{tpu_custom_call.1} parent=47 // pred_fallthru
          _
        %s312 = sand.u32 %s34, 1
        %s313 = scalar_lea.sflag [#allocation3], %s312
        %s314 = sand.u32 %s34, 1
        %s315 = smul.addr %s314, 8
        %s316 = scalar_lea.vmem [#allocation2], %s315
        %p317 = pneg %p47
        %p318 = pneg %p44
        %p319 = pneg %p68
        %p320 = pneg %p65
        %p321 = pneg %p89
        %p322 = pneg %p86
        %p323 = pneg %p110
        %p324 = pneg %p107
        %p325 = pneg %p131
        %p326 = pneg %p128
        %p327 = pneg %p152
        %p328 = pneg %p149
        %p329 = pneg %p173
        %p330 = pneg %p170
        %p331 = pneg %p199
        %p332 = pneg %p196
        %s333 = sand.u32 %s186, 1
        %s334 = scalar_lea.sflag [#allocation4], %s333
        %s335 = sand.u32 %s186, 1
        %s336 = smul.addr %s335, 8
        %s337 = scalar_lea.vmem [#allocation10], %s336
        %v339 = vld [vmem:[%s295] sm:$0xff]
        %v340 = vpack.c.bf16 %v339, %v339
        %v341 = vld [vmem:[#allocation5] sm:$0xf]
        %v342 = vld [vmem:[#allocation5 + $0x4] sm:$0xf]
        %v343 = vld [vmem:[#allocation5 + $0x8] sm:$0xf]
        %v344 = vld [vmem:[#allocation5 + $0xc] sm:$0xf]
        %v345 = vld [vmem:[#allocation5 + $0x10] sm:$0xf]
        %v346 = vld [vmem:[#allocation5 + $0x14] sm:$0xf]
        %v347 = vld [vmem:[#allocation5 + $0x18] sm:$0xf]
        %v348 = vld [vmem:[#allocation5 + $0x1c] sm:$0xf]
        %v349 = vld [vmem:[#allocation5 + $0x20] sm:$0xf]
        %v350 = vld [vmem:[#allocation5 + $0x24] sm:$0xf]
        %v351 = vld [vmem:[#allocation5 + $0x28] sm:$0xf]
        %v352 = vld [vmem:[#allocation5 + $0x2c] sm:$0xf]
        %v353 = vld [vmem:[#allocation5 + $0x30] sm:$0xf]
        %v354 = vld [vmem:[#allocation5 + $0x34] sm:$0xf]
        %v355 = vld [vmem:[#allocation5 + $0x38] sm:$0xf]
        %v356 = vld [vmem:[#allocation5 + $0x3c] sm:$0xf]
        %v357 = vld [vmem:[%s2] sm:$0x1]
        %v359 = vlaneseq
        %v360 = vshrl.u32 %v359, 7
        %v361 = vsub.s32 0, %v360
        %v362 = vrot.slane %v357, %v361
        %v380 = vunpack.c.l.b16 %v341
        %v381 = vunpack.c.l.b16 %v342
        %v382 = vunpack.c.l.b16 %v343
        %v383 = vunpack.c.l.b16 %v344
        %v384 = vunpack.c.l.b16 %v345
        %v385 = vunpack.c.l.b16 %v346
        %v386 = vunpack.c.l.b16 %v347
        %v387 = vunpack.c.l.b16 %v348
        %v388 = vunpack.c.l.b16 %v349
        %v389 = vunpack.c.l.b16 %v350
        %v390 = vunpack.c.l.b16 %v351
        %v391 = vunpack.c.l.b16 %v352
        %v392 = vunpack.c.l.b16 %v353
        %v393 = vunpack.c.l.b16 %v354
        %v394 = vunpack.c.l.b16 %v355
        %v395 = vunpack.c.l.b16 %v356
        %v396 = vpack.c.b16 %v381, %v380
        %v397 = vpack.c.b16 %v383, %v382
        %v398 = vpack.c.b16 %v385, %v384
        %v399 = vpack.c.b16 %v387, %v386
        %v400 = vpack.c.b16 %v389, %v388
        %v401 = vpack.c.b16 %v391, %v390
        %v402 = vpack.c.b16 %v393, %v392
        %v403 = vpack.c.b16 %v395, %v394
        %412 = vmatprep.subr.bf16.mxu0 0
        %413 = vmatpush1.bf16.msra.mxu0 %v396
        %414 = vmatprep.subr.bf16.mxu0 0
        %415 = vmatpush1.bf16.msra.mxu0 %v397
        %416 = vmatprep.subr.bf16.mxu0 0
        %417 = vmatpush1.bf16.msra.mxu0 %v398
        %418 = vmatprep.subr.bf16.mxu0 0
        %419 = vmatpush1.bf16.msra.mxu0 %v399
        %420 = vmatprep.subr.bf16.mxu0 0
        %421 = vmatpush1.bf16.msra.mxu0 %v400
        %422 = vmatprep.subr.bf16.mxu0 0
        %423 = vmatpush1.bf16.msra.mxu0 %v401
        %424 = vmatprep.subr.bf16.mxu0 0
        %425 = vmatpush1.bf16.msra.mxu0 %v402
        %426 = vmatprep.subr.bf16.mxu0 0
        %427 = vmatpush1.bf16.msra.mxu0 %v403
        %428 = vmatprep.subr.bf16.mxu0 0
        %429 = vmatpush1.bf16.msra.mxu0 0
        %430 = vmatprep.subr.bf16.mxu0 0
        %431 = vmatpush1.bf16.msra.mxu0 0
        %432 = vmatprep.subr.bf16.mxu0 0
        %433 = vmatpush1.bf16.msra.mxu0 0
        %434 = vmatprep.subr.bf16.mxu0 0
        %435 = vmatpush1.bf16.msra.mxu0 0
        %436 = vmatprep.subr.bf16.mxu0 0
        %437 = vmatpush1.bf16.msra.mxu0 0
        %438 = vmatprep.subr.bf16.mxu0 0
        %439 = vmatpush1.bf16.msra.mxu0 0
        %440 = vmatprep.subr.bf16.mxu0 0
        %441 = vmatpush1.bf16.msra.mxu0 0
        %442 = vmatprep.subr.bf16.mxu0 0
        %443 = vmatpush1.bf16.msra.mxu0 0
        %444 = vmatprep.mubr.bf16.mxu0 0
        %445 = vmatmul.mubr.bf16.gmra.mrb[0].mxu0 %v340
        %v446 = vpop.f32.mrb[0].mxu0
        %v447 = vadd.f32 %v362, %v446
        %v448 = vpop.f32.mrb[0].mxu0
        %v449 = vpop.f32.mrb[0].mxu0
        %v450 = vpop.f32.mrb[0].mxu0
        %451 = vdwg.mxu0
        %v452 = vmax.f32 %v447, 0.0
        %453 = vadd.xlane.f32.xlu0 %v452
        %v454 = vpop.xlane.xlu0 %453
        %v455 = vmul.f32 %v452, %v452
        %456 = vadd.xlane.f32.xlu0 %v455
        %v457 = vpop.xlane.xlu0 %456
        %v458 = vmul.f32 %v454, 0.0078125
        %v459 = vmul.f32 %v457, 0.0078125
        %v460 = vmul.f32 %v458, %v458
        %v461 = vsub.f32 %v459, %v460
        %v462 = vmax.f32 %v461, 0.0
        %v463 = vsub.f32 %v452, %v458
        %v464 = vadd.f32 %v462, 1e-05
        %v465 = vrsqrt.pop %v464
        %v466 = vmul.f32 %v463, %v465
        %v467 = vpack.c.bf16 %v466, %v466
        %v468 = vld [vmem:[#allocation7] sm:$0xff]
        %v469 = vld [vmem:[#allocation7 + $0x8] sm:$0xff]
        %v470 = vld [vmem:[#allocation7 + $0x10] sm:$0xff]
        %v471 = vld [vmem:[#allocation7 + $0x18] sm:$0xff]
        %v472 = vld [vmem:[#allocation7 + $0x20] sm:$0xff]
        %v473 = vld [vmem:[#allocation7 + $0x28] sm:$0xff]
        %v474 = vld [vmem:[#allocation7 + $0x30] sm:$0xff]
        %v475 = vld [vmem:[#allocation7 + $0x38] sm:$0xff]
        %v476 = vld [vmem:[#allocation7 + $0x40] sm:$0xff]
        %v477 = vld [vmem:[#allocation7 + $0x48] sm:$0xff]
        %v478 = vld [vmem:[#allocation7 + $0x50] sm:$0xff]
        %v479 = vld [vmem:[#allocation7 + $0x58] sm:$0xff]
        %v480 = vld [vmem:[#allocation7 + $0x60] sm:$0xff]
        %v481 = vld [vmem:[#allocation7 + $0x68] sm:$0xff]
        %v482 = vld [vmem:[#allocation7 + $0x70] sm:$0xff]
        %v483 = vld [vmem:[#allocation7 + $0x78] sm:$0xff]
        %v484 = vld [vmem:[%s4] sm:$0x3]
        %v486 = vlaneseq
        %v487 = vshrl.u32 %v486, 7
        %v488 = vsub.s32 0, %v487
        %v489 = vrot.slane %v484, %v488
        %v490 = vlaneseq
        %v491 = vshrl.u32 %v490, 7
        %v492 = vsub.s32 1, %v491
        %v493 = vrot.slane %v484, %v492
        %v512 = vunpack.c.l.b16 %v468
        %v513 = vunpack.c.h.b16 %v468
        %v514 = vunpack.c.l.b16 %v469
        %v515 = vunpack.c.h.b16 %v469
        %v516 = vunpack.c.l.b16 %v470
        %v517 = vunpack.c.h.b16 %v470
        %v518 = vunpack.c.l.b16 %v471
        %v519 = vunpack.c.h.b16 %v471
        %v520 = vunpack.c.l.b16 %v472
        %v521 = vunpack.c.h.b16 %v472
        %v522 = vunpack.c.l.b16 %v473
        %v523 = vunpack.c.h.b16 %v473
        %v524 = vunpack.c.l.b16 %v474
        %v525 = vunpack.c.h.b16 %v474
        %v526 = vunpack.c.l.b16 %v475
        %v527 = vunpack.c.h.b16 %v475
        %v528 = vunpack.c.l.b16 %v476
        %v529 = vunpack.c.h.b16 %v476
        %v530 = vunpack.c.l.b16 %v477
        %v531 = vunpack.c.h.b16 %v477
        %v532 = vunpack.c.l.b16 %v478
        %v533 = vunpack.c.h.b16 %v478
        %v534 = vunpack.c.l.b16 %v479
        %v535 = vunpack.c.h.b16 %v479
        %v536 = vunpack.c.l.b16 %v480
        %v537 = vunpack.c.h.b16 %v480
        %v538 = vunpack.c.l.b16 %v481
        %v539 = vunpack.c.h.b16 %v481
        %v540 = vunpack.c.l.b16 %v482
        %v541 = vunpack.c.h.b16 %v482
        %v542 = vunpack.c.l.b16 %v483
        %v543 = vunpack.c.h.b16 %v483
        %v544 = vpack.c.b16 %v514, %v512
        %v545 = vpack.c.b16 %v515, %v513
        %v546 = vpack.c.b16 %v518, %v516
        %v547 = vpack.c.b16 %v519, %v517
        %v548 = vpack.c.b16 %v522, %v520
        %v549 = vpack.c.b16 %v523, %v521
        %v550 = vpack.c.b16 %v526, %v524
        %v551 = vpack.c.b16 %v527, %v525
        %v552 = vpack.c.b16 %v530, %v528
        %v553 = vpack.c.b16 %v531, %v529
        %v554 = vpack.c.b16 %v534, %v532
        %v555 = vpack.c.b16 %v535, %v533
        %v556 = vpack.c.b16 %v538, %v536
        %v557 = vpack.c.b16 %v539, %v537
        %v558 = vpack.c.b16 %v542, %v540
        %v559 = vpack.c.b16 %v543, %v541
        %576 = vmatprep.subr.bf16.mxu0 %v545
        %577 = vmatpush1.bf16.msra.mxu0 %v544
        %578 = vmatprep.subr.bf16.mxu0 %v547
        %579 = vmatpush1.bf16.msra.mxu0 %v546
        %580 = vmatprep.subr.bf16.mxu0 %v549
        %581 = vmatpush1.bf16.msra.mxu0 %v548
        %582 = vmatprep.subr.bf16.mxu0 %v551
        %583 = vmatpush1.bf16.msra.mxu0 %v550
        %584 = vmatprep.subr.bf16.mxu0 %v553
        %585 = vmatpush1.bf16.msra.mxu0 %v552
        %586 = vmatprep.subr.bf16.mxu0 %v555
        %587 = vmatpush1.bf16.msra.mxu0 %v554
        %588 = vmatprep.subr.bf16.mxu0 %v557
        %589 = vmatpush1.bf16.msra.mxu0 %v556
        %590 = vmatprep.subr.bf16.mxu0 %v559
        %591 = vmatpush1.bf16.msra.mxu0 %v558
        %592 = vmatprep.subr.bf16.mxu0 0
        %593 = vmatpush1.bf16.msra.mxu0 0
        %594 = vmatprep.subr.bf16.mxu0 0
        %595 = vmatpush1.bf16.msra.mxu0 0
        %596 = vmatprep.subr.bf16.mxu0 0
        %597 = vmatpush1.bf16.msra.mxu0 0
        %598 = vmatprep.subr.bf16.mxu0 0
        %599 = vmatpush1.bf16.msra.mxu0 0
        %600 = vmatprep.subr.bf16.mxu0 0
        %601 = vmatpush1.bf16.msra.mxu0 0
        %602 = vmatprep.subr.bf16.mxu0 0
        %603 = vmatpush1.bf16.msra.mxu0 0
        %604 = vmatprep.subr.bf16.mxu0 0
        %605 = vmatpush1.bf16.msra.mxu0 0
        %606 = vmatprep.subr.bf16.mxu0 0
        %607 = vmatpush1.bf16.msra.mxu0 0
        %608 = vmatprep.mubr.bf16.mxu0 0
        %609 = vmatmul.mubr.bf16.gmra.mrb[0].mxu0 %v467
        %v610 = vpop.f32.mrb[0].mxu0
        %v611 = vadd.f32 %v489, %v610
        %v612 = vpop.f32.mrb[0].mxu0
        %v613 = vadd.f32 %v493, %v612
        %v614 = vpop.f32.mrb[0].mxu0
        %v615 = vpop.f32.mrb[0].mxu0
        %616 = vdwg.mxu0
        %v617 = vmul.f32 %v611, 0.2
        %v618 = vmul.f32 %v613, 0.2
        %v619 = vmax.f32 %v611, %v617
        %v620 = vmax.f32 %v613, %v618
        %v621 = vpack.c.bf16 %v619, %v619
        %v622 = vpack.c.bf16 %v620, %v620
        %v623 = vld [vmem:[#allocation8] sm:$0xf]
        %v624 = vld [vmem:[#allocation8 + $0x4] sm:$0xf]
        %v625 = vld [vmem:[#allocation8 + $0x8] sm:$0xf]
        %v626 = vld [vmem:[#allocation8 + $0xc] sm:$0xf]
        %v627 = vld [vmem:[#allocation8 + $0x10] sm:$0xf]
        %v628 = vld [vmem:[#allocation8 + $0x14] sm:$0xf]
        %v629 = vld [vmem:[#allocation8 + $0x18] sm:$0xf]
        %v630 = vld [vmem:[#allocation8 + $0x1c] sm:$0xf]
        %v631 = vld [vmem:[#allocation8 + $0x20] sm:$0xf]
        %v632 = vld [vmem:[#allocation8 + $0x24] sm:$0xf]
        %v633 = vld [vmem:[#allocation8 + $0x28] sm:$0xf]
        %v634 = vld [vmem:[#allocation8 + $0x2c] sm:$0xf]
        %v635 = vld [vmem:[#allocation8 + $0x30] sm:$0xf]
        %v636 = vld [vmem:[#allocation8 + $0x34] sm:$0xf]
        %v637 = vld [vmem:[#allocation8 + $0x38] sm:$0xf]
        %v638 = vld [vmem:[#allocation8 + $0x3c] sm:$0xf]
        %v639 = vld [vmem:[#allocation8 + $0x40] sm:$0xf]
        %v640 = vld [vmem:[#allocation8 + $0x44] sm:$0xf]
        %v641 = vld [vmem:[#allocation8 + $0x48] sm:$0xf]
        %v642 = vld [vmem:[#allocation8 + $0x4c] sm:$0xf]
        %v643 = vld [vmem:[#allocation8 + $0x50] sm:$0xf]
        %v644 = vld [vmem:[#allocation8 + $0x54] sm:$0xf]
        %v645 = vld [vmem:[#allocation8 + $0x58] sm:$0xf]
        %v646 = vld [vmem:[#allocation8 + $0x5c] sm:$0xf]
        %v647 = vld [vmem:[#allocation8 + $0x60] sm:$0xf]
        %v648 = vld [vmem:[#allocation8 + $0x64] sm:$0xf]
        %v649 = vld [vmem:[#allocation8 + $0x68] sm:$0xf]
        %v650 = vld [vmem:[#allocation8 + $0x6c] sm:$0xf]
        %v651 = vld [vmem:[#allocation8 + $0x70] sm:$0xf]
        %v652 = vld [vmem:[#allocation8 + $0x74] sm:$0xf]
        %v653 = vld [vmem:[#allocation8 + $0x78] sm:$0xf]
        %v654 = vld [vmem:[#allocation8 + $0x7c] sm:$0xf]
        %v655 = vld [vmem:[%s6] sm:$0x1]
        %v657 = vlaneseq
        %v658 = vshrl.u32 %v657, 7
        %v659 = vsub.s32 0, %v658
        %v660 = vrot.slane %v655, %v659
        %v694 = vunpack.c.l.b16 %v623
        %v695 = vunpack.c.l.b16 %v624
        %v696 = vunpack.c.l.b16 %v625
        %v697 = vunpack.c.l.b16 %v626
        %v698 = vunpack.c.l.b16 %v627
        %v699 = vunpack.c.l.b16 %v628
        %v700 = vunpack.c.l.b16 %v629
        %v701 = vunpack.c.l.b16 %v630
        %v702 = vunpack.c.l.b16 %v631
        %v703 = vunpack.c.l.b16 %v632
        %v704 = vunpack.c.l.b16 %v633
        %v705 = vunpack.c.l.b16 %v634
        %v706 = vunpack.c.l.b16 %v635
        %v707 = vunpack.c.l.b16 %v636
        %v708 = vunpack.c.l.b16 %v637
        %v709 = vunpack.c.l.b16 %v638
        %v710 = vunpack.c.l.b16 %v639
        %v711 = vunpack.c.l.b16 %v640
        %v712 = vunpack.c.l.b16 %v641
        %v713 = vunpack.c.l.b16 %v642
        %v714 = vunpack.c.l.b16 %v643
        %v715 = vunpack.c.l.b16 %v644
        %v716 = vunpack.c.l.b16 %v645
        %v717 = vunpack.c.l.b16 %v646
        %v718 = vunpack.c.l.b16 %v647
        %v719 = vunpack.c.l.b16 %v648
        %v720 = vunpack.c.l.b16 %v649
        %v721 = vunpack.c.l.b16 %v650
        %v722 = vunpack.c.l.b16 %v651
        %v723 = vunpack.c.l.b16 %v652
        %v724 = vunpack.c.l.b16 %v653
        %v725 = vunpack.c.l.b16 %v654
        %v726 = vpack.c.b16 %v695, %v694
        %v727 = vpack.c.b16 %v697, %v696
        %v728 = vpack.c.b16 %v699, %v698
        %v729 = vpack.c.b16 %v701, %v700
        %v730 = vpack.c.b16 %v703, %v702
        %v731 = vpack.c.b16 %v705, %v704
        %v732 = vpack.c.b16 %v707, %v706
        %v733 = vpack.c.b16 %v709, %v708
        %v734 = vpack.c.b16 %v711, %v710
        %v735 = vpack.c.b16 %v713, %v712
        %v736 = vpack.c.b16 %v715, %v714
        %v737 = vpack.c.b16 %v717, %v716
        %v738 = vpack.c.b16 %v719, %v718
        %v739 = vpack.c.b16 %v721, %v720
        %v740 = vpack.c.b16 %v723, %v722
        %v741 = vpack.c.b16 %v725, %v724
        %758 = vmatprep.subr.bf16.mxu0 0
        %759 = vmatpush1.bf16.msra.mxu0 %v726
        %760 = vmatprep.subr.bf16.mxu0 0
        %761 = vmatpush1.bf16.msra.mxu0 %v727
        %762 = vmatprep.subr.bf16.mxu0 0
        %763 = vmatpush1.bf16.msra.mxu0 %v728
        %764 = vmatprep.subr.bf16.mxu0 0
        %765 = vmatpush1.bf16.msra.mxu0 %v729
        %766 = vmatprep.subr.bf16.mxu0 0
        %767 = vmatpush1.bf16.msra.mxu0 %v730
        %768 = vmatprep.subr.bf16.mxu0 0
        %769 = vmatpush1.bf16.msra.mxu0 %v731
        %770 = vmatprep.subr.bf16.mxu0 0
        %771 = vmatpush1.bf16.msra.mxu0 %v732
        %772 = vmatprep.subr.bf16.mxu0 0
        %773 = vmatpush1.bf16.msra.mxu0 %v733
        %774 = vmatprep.subr.bf16.mxu0 0
        %775 = vmatpush1.bf16.msra.mxu0 %v734
        %776 = vmatprep.subr.bf16.mxu0 0
        %777 = vmatpush1.bf16.msra.mxu0 %v735
        %778 = vmatprep.subr.bf16.mxu0 0
        %779 = vmatpush1.bf16.msra.mxu0 %v736
        %780 = vmatprep.subr.bf16.mxu0 0
        %781 = vmatpush1.bf16.msra.mxu0 %v737
        %782 = vmatprep.subr.bf16.mxu0 0
        %783 = vmatpush1.bf16.msra.mxu0 %v738
        %784 = vmatprep.subr.bf16.mxu0 0
        %785 = vmatpush1.bf16.msra.mxu0 %v739
        %786 = vmatprep.subr.bf16.mxu0 0
        %787 = vmatpush1.bf16.msra.mxu0 %v740
        %788 = vmatprep.subr.bf16.mxu0 0
        %789 = vmatpush1.bf16.msra.mxu0 %v741
        %790 = vmatprep.mubr.bf16.mxu0 %v622
        %791 = vmatmul.mubr.bf16.gmra.mrb[0].mxu0 %v621
        %v792 = vpop.f32.mrb[0].mxu0
        %v793 = vadd.f32 %v660, %v792
        %v794 = vpop.f32.mrb[0].mxu0
        %v795 = vpop.f32.mrb[0].mxu0
        %v796 = vpop.f32.mrb[0].mxu0
        %797 = vdwg.mxu0
        %v798 = vadd.f32 %v466, %v793
        %799 = vadd.xlane.f32.xlu0 %v798
        %v800 = vpop.xlane.xlu0 %799
        %v801 = vmul.f32 %v798, %v798
        %802 = vadd.xlane.f32.xlu0 %v801
        %v803 = vpop.xlane.xlu0 %802
        %v804 = vmul.f32 %v800, 0.0078125
        %v805 = vmul.f32 %v803, 0.0078125
        %v806 = vmul.f32 %v804, %v804
        %v807 = vsub.f32 %v805, %v806
        %v808 = vmax.f32 %v807, 0.0
        %v809 = vsub.f32 %v798, %v804
        %v810 = vadd.f32 %v808, 1e-05
        %v811 = vrsqrt.pop %v810
        %v812 = vmul.f32 %v809, %v811
        %813 = vst [vmem:[%s337] sm:$0xff] %v812
        %s814 = sand.u32 %s186, 1
        %s815 = scalar_lea.sflag [#allocation4], %s814
        %s816 = sand.u32 %s186, 1
        %s817 = smul.addr %s816, 8
        %s818 = scalar_lea.vmem [#allocation10], %s817
        // Predicated region
        $region65: #{tpu_custom_call.1} parent=47 // pred_check
          %p819 = pneg %p196
        $region66: #{tpu_custom_call.1} parent=47 // pred_check_branch
          %821 = sbr.rel (%p819) target = $region68
        $region67: #{tpu_custom_call.1} parent=47 // pred_region
          %s823 = ssub.s32 128, 128
          %824 = vsyncadd %s815, %s823
          %s825 = smul.addr %s26, 128
          %s826 = scalar_lea.hbm %s7, %s825
          %s828 = sshll.u32 %s818, 4
          %s829 = int_to_ptr.vmem [resolvable:$true] %s828
          %831 = dma.vmem_to_hbm [thread:$0]  %s829, 128, %s826, %s815
        $region68: #{tpu_custom_call.1} parent=47 // pred_fallthru
          _
      $region48: #{tpu_custom_call.1} parent=5 // pred_fallthru
        _
      %p832 = scmp.le.s32.totalorder 2, %s21
      // Predicated region
      $region69: #{tpu_custom_call.1} parent=5 // pred_check
        %p833 = pneg %p832
      $region70: #{tpu_custom_call.1} parent=5 // pred_check_branch
        %835 = sbr.rel (%p833) target = $region72
      $region71: #{tpu_custom_call.1} parent=5 // pred_region
        %s836 = ssub.s32 %s21, 2
        // Predicated region
        $region73: #{tpu_custom_call.1} parent=71 // pred_check
          %p837 = pneg %p202
        $region74: #{tpu_custom_call.1} parent=71 // pred_check_branch
          %839 = sbr.rel (%p837) target = $region76
        $region75: #{tpu_custom_call.1} parent=71 // pred_region
          %s840 = sand.u32 %s187, 1
          %s841 = scalar_lea.sflag [#allocation4], %s840
          %s842 = sand.u32 %s187, 1
          %s843 = smul.addr %s842, 8
          %s844 = scalar_lea.vmem [#allocation10], %s843
          %845 = dma.done %s841, 128
        $region76: #{tpu_custom_call.1} parent=71 // pred_fallthru
          _
      $region72: #{tpu_custom_call.1} parent=5 // pred_fallthru
        _
    $region6: #{tpu_custom_call.1} parent=1 // loop_footer
      %s25 = sadd.s32 1, %s21
    $region7: #{tpu_custom_call.1} parent=1 // loop_footer_branch
      %20 = sbr.rel target = $region3
    $region8: #{tpu_custom_call.1} parent=1 // loop_exit
      _
    %846 = vsyncpa [#allocation3], 1
    %s847 = scalar_lea.sflag [#allocation3], 1
    %848 = vsyncpa %s847, 1
    %849 = vsyncpa [#allocation6], 1
    %850 = vsyncpa [#allocation9], 1
    %851 = vsyncpa [#allocation4], 1
    %s852 = scalar_lea.sflag [#allocation4], 1
    %853 = vsyncpa %s852, 1

</llo_original>
